<compile_context>
chip_gen: v7x
topology: tpu7x:2x2x1
jax: 0.10.0
libtpu: 0.0.40
codegen_flags: <defaults>
</compile_context>

<pallas_src>
import jax
import jax.numpy as jnp
from jax.experimental import pallas as pl
from jax.experimental.pallas import tpu as pltpu

_TM_CAP = 512
_TN_CAP = 512
_TK_CAP = 2048
_SMALL_FALLBACK_ELEMS = 1 << 18  # B*F*H below this -> plain JAX (launch overhead dominates)


def _round_up(x, m):
    return ((x + m - 1) // m) * m


def _pick_lane_tile(d, cap):
    """Lane-dim tile: full (128-padded) dim when it fits, 256-aligned above 128."""
    dp = _round_up(d, 128)
    if dp <= 128:
        return 128
    if dp >= cap:
        return cap
    return _round_up(dp, 256)  # 256-aligned for the v6e/v7x 2x256x256 MXU


def _receiver_kernel_f32_out(x_ref, w_ref, b_ref, o_ref):
    # f32 output: accumulate directly in the output tile (no scratch, no copy).
    # x_ref: [tm, tk]  w_ref: [tk, tn] (pre-transposed)  b_ref: [1, tn]  o_ref: [tm, tn]
    k = pl.program_id(2)

    @pl.when(k == 0)
    def _():
        o_ref[...] = jnp.zeros_like(o_ref)

    o_ref[...] += jnp.dot(x_ref[...], w_ref[...], preferred_element_type=jnp.float32)

    @pl.when(k == pl.num_programs(2) - 1)
    def _():
        o_ref[...] += b_ref[...].astype(jnp.float32)


def _receiver_kernel_acc(x_ref, w_ref, b_ref, o_ref, acc_ref):
    # Non-f32 output: f32 accumulator scratch, cast once in the finalize branch.
    k = pl.program_id(2)

    @pl.when(k == 0)
    def _():
        acc_ref[...] = jnp.zeros_like(acc_ref)

    acc_ref[...] += jnp.dot(x_ref[...], w_ref[...], preferred_element_type=jnp.float32)

    @pl.when(k == pl.num_programs(2) - 1)
    def _():
        o_ref[...] = (acc_ref[...] + b_ref[...].astype(jnp.float32)).astype(o_ref.dtype)


def prepare_receiver_params(weight, bias, param_dtype=None):
    """One-time parameter preparation (hoisted out of the per-call path).

    weight: [n_features, n_hidden] (PyTorch nn.Linear convention), bias: [n_features]
      * zero-pads F/H to tile multiples (done once, not per forward),
      * pre-transposes the weight to [Hp, Fp] so the kernel runs the MXU's
        native [M,K] x [K,N] contraction,
      * optional bf16 cast for the weight-streaming-bound path.
    """
    F, H = weight.shape
    tn = _pick_lane_tile(F, _TN_CAP)
    tk = _pick_lane_tile(H, _TK_CAP)
    Fp = _round_up(F, tn)
    Hp = _round_up(H, tk)

    w = weight if param_dtype is None else weight.astype(param_dtype)
    if (Fp, Hp) != (F, H):
        w = jnp.pad(w, ((0, Fp - F), (0, Hp - H)))
    w_t = jnp.transpose(w)  # [Hp, Fp], one-time

    b = bias.astype(jnp.float32)
    if Fp != F:
        b = jnp.pad(b, (0, Fp - F))
    b = b.reshape(1, Fp)

    return dict(w_t=w_t, b=b, F=F, H=H, Fp=Fp, Hp=Hp, tn=tn, tk=tk)


def receiver_forward(x, params, _input=None, _aux_input=None, use_pallas=None):
    """Equivalent of Receiver.forward: linear layer on the message embedding x.

    x: [B, n_hidden]  ->  [B, n_features]
    """
    B, H = x.shape
    assert H == params["H"], "hidden size mismatch with prepared params"
    F, Fp, Hp = params["F"], params["Fp"], params["Hp"]
    tn, tk = params["tn"], params["tk"]
    w_t, b = params["w_t"], params["b"]
    out_dtype = x.dtype

    if use_pallas is None:
        use_pallas = (B * F * H) >= _SMALL_FALLBACK_ELEMS
    if not use_pallas:
        # Tiny problem: a pallas_call is pure launch/DMA overhead; let XLA fuse it.
        y = jnp.dot(x.astype(w_t.dtype), w_t[:H, :F],
                    preferred_element_type=jnp.float32) + b[0, :F]
        return y.astype(out_dtype)

    # Run the MXU in the weight's precision (bf16 path halves x traffic too);
    # accumulation is always f32 inside the kernel.
    x_in = x if x.dtype == w_t.dtype else x.astype(w_t.dtype)
    sub = 16 if x_in.dtype == jnp.bfloat16 else 8
    tm = min(_round_up(B, sub), _TM_CAP)
    Bp = _round_up(B, tm)

    # v7x: 2 TensorCores, only parallel (M/N) axes shard across them. With a
    # single M tile and a single N tile one core idles -> split N in two.
    if Bp // tm == 1 and Fp // tn == 1 and Fp >= 256 and Fp % 256 == 0:
        tn = Fp // 2

    xp = x_in if (Bp == B and Hp == H) else jnp.pad(x_in, ((0, Bp - B), (0, Hp - H)))

    grid = (Bp // tm, Fp // tn, Hp // tk)
    out_is_f32 = (out_dtype == jnp.float32)
    kernel = _receiver_kernel_f32_out if out_is_f32 else _receiver_kernel_acc
    scratch = [] if out_is_f32 else [pltpu.VMEM((tm, tn), jnp.float32)]

    out = pl.pallas_call(
        kernel,
        out_shape=jax.ShapeDtypeStruct((Bp, Fp), out_dtype),
        grid_spec=pltpu.PrefetchScalarGridSpec(
            num_scalar_prefetch=0,
            grid=grid,
            in_specs=[
                pl.BlockSpec((tm, tk), lambda i, j, k: (i, k)),   # x  [Bp, Hp]
                pl.BlockSpec((tk, tn), lambda i, j, k: (k, j)),   # W^T [Hp, Fp] (pre-transposed)
                pl.BlockSpec((1, tn), lambda i, j, k: (0, j)),    # bias [1, Fp]
            ],
            out_specs=pl.BlockSpec((tm, tn), lambda i, j, k: (i, j)),
            scratch_shapes=scratch,
        ),
        compiler_params=pltpu.CompilerParams(
            dimension_semantics=("parallel", "parallel", "arbitrary"),
            vmem_limit_bytes=32 * 1024 * 1024),
    )(xp, w_t, b)

    if (Bp, Fp) != (B, F):
        out = out[:B, :F]
    return out


if __name__ == "__main__":
    # Small shapes consistent with the module: n_hidden=32, n_features=16, batch=8
    B, n_hidden, n_features = 8, 32, 16

    key = jax.random.PRNGKey(0)
    kx, kw, kb = jax.random.split(key, 3)

    x = jax.random.normal(kx, (B, n_hidden), dtype=jnp.float32)
    bound = 1.0 / (n_hidden ** 0.5)
    weight = jax.random.uniform(kw, (n_features, n_hidden),
                                minval=-bound, maxval=bound, dtype=jnp.float32)
    bias = jax.random.uniform(kb, (n_features,),
                              minval=-bound, maxval=bound, dtype=jnp.float32)

    # One-time parameter prep (pad + transpose hoisted out of the forward path).
    params = prepare_receiver_params(weight, bias)

    # Toy shape: force the Pallas path so the kernel is actually exercised.
    out = receiver_forward(x, params, None, None, use_pallas=True)
    out = jax.block_until_ready(out)
    ref = x @ weight.T + bias
    assert out.shape == (B, n_features)
    assert jnp.allclose(out, ref, atol=1e-5, rtol=1e-5)

    # Larger shape: multi-tile grid, auto path selection (f32 weights).
    B2, H2, F2 = 256, 512, 1024
    k2, k3, k4 = jax.random.split(jax.random.PRNGKey(1), 3)
    x2 = jax.random.normal(k2, (B2, H2), dtype=jnp.float32)
    w2 = jax.random.normal(k3, (F2, H2), dtype=jnp.float32) * 0.02
    b2 = jax.random.normal(k4, (F2,), dtype=jnp.float32)
    ref2 = x2 @ w2.T + b2

    p2 = prepare_receiver_params(w2, b2)
    out2 = jax.block_until_ready(receiver_forward(x2, p2, None, None))
    assert jnp.allclose(out2, ref2, atol=1e-4, rtol=1e-4)

    # bf16 weight path (halved HBM traffic; f32 accumulation in the kernel).
    p2_bf16 = prepare_receiver_params(w2, b2, param_dtype=jnp.bfloat16)
    out3 = jax.block_until_ready(receiver_forward(x2, p2_bf16, None, None))
    assert jnp.allclose(out3, ref2, atol=5e-2, rtol=5e-2)

    print("KERNEL_OK")
</pallas_src>

<mosaic_0001>
module attributes {stable_mosaic.version = 11 : i64} {
  func.func @_receiver_kernel_f32_out(%arg0: i32, %arg1: i32, %arg2: i32, %arg3: memref<8x128xf32, #tpu.memory_space<vmem>>, %arg4: memref<128x128xf32, #tpu.memory_space<vmem>>, %arg5: memref<1x128xf32, #tpu.memory_space<vmem>>, %arg6: memref<8x128xf32, #tpu.memory_space<vmem>>) attributes {dimension_semantics = [#tpu.dimension_semantics<parallel>, #tpu.dimension_semantics<parallel>, #tpu.dimension_semantics<arbitrary>], iteration_bounds = array<i64: 1, 1, 1>, scalar_prefetch = 0 : i64, scratch_operands = 0 : i64, tpu.core_type = #tpu.core_type<tc>, window_params = [{transform_indices = @transform_0, window_bounds = array<i64: 8, 128>}, {transform_indices = @transform_1, window_bounds = array<i64: 128, 128>}, {transform_indices = @transform_2, window_bounds = array<i64: 1, 128>}, {transform_indices = @transform_3, window_bounds = array<i64: 8, 128>}]} {
    %c0_i32 = arith.constant 0 : i32
    %0 = arith.cmpi eq, %arg2, %c0_i32 : i32
    %1 = arith.extui %0 : i1 to i32
    %c0_i32_0 = arith.constant 0 : i32
    %2 = arith.cmpi ne, %1, %c0_i32_0 : i32
    scf.if %2 {
      %cst_10 = arith.constant 0.000000e+00 : f32
      %12 = vector.broadcast %cst_10 : f32 to vector<8x128xf32>
      %c0_11 = arith.constant 0 : index
      %c0_12 = arith.constant 0 : index
      %13 = vector.load %arg6[%c0_11, %c0_12] : memref<8x128xf32, #tpu.memory_space<vmem>>, vector<8x128xf32>
      tpu.vector_store %arg6[%c0_11, %c0_12], %12 {strides = array<i32>} : memref<8x128xf32, #tpu.memory_space<vmem>>, vector<8x128xf32>,
    } else {
    }
    %c0 = arith.constant 0 : index
    %c0_1 = arith.constant 0 : index
    %3 = vector.load %arg6[%c0, %c0_1] : memref<8x128xf32, #tpu.memory_space<vmem>>, vector<8x128xf32>
    %c0_2 = arith.constant 0 : index
    %c0_3 = arith.constant 0 : index
    %4 = vector.load %arg3[%c0_2, %c0_3] : memref<8x128xf32, #tpu.memory_space<vmem>>, vector<8x128xf32>
    %c0_4 = arith.constant 0 : index
    %c0_5 = arith.constant 0 : index
    %5 = vector.load %arg4[%c0_4, %c0_5] : memref<128x128xf32, #tpu.memory_space<vmem>>, vector<128x128xf32>
    %cst = arith.constant dense<0.000000e+00> : vector<8x128xf32>
    %6 = tpu.matmul %4, %5, %cst {dimension_numbers = #tpu.dot_dimension_numbers<[1], [0], [0], [1], [0, 0, 1, 1], [], []>} : vector<8x128xf32>, vector<128x128xf32>, vector<8x128xf32> -> vector<8x128xf32>
    %7 = arith.addf %3, %6 : vector<8x128xf32>
    %c0_6 = arith.constant 0 : index
    %c0_7 = arith.constant 0 : index
    %8 = vector.load %arg6[%c0_6, %c0_7] : memref<8x128xf32, #tpu.memory_space<vmem>>, vector<8x128xf32>
    tpu.vector_store %arg6[%c0_6, %c0_7], %7 {strides = array<i32>} : memref<8x128xf32, #tpu.memory_space<vmem>>, vector<8x128xf32>,
    %c0_i32_8 = arith.constant 0 : i32
    %9 = arith.cmpi eq, %arg2, %c0_i32_8 : i32
    %10 = arith.extui %9 : i1 to i32
    %c0_i32_9 = arith.constant 0 : i32
    %11 = arith.cmpi ne, %10, %c0_i32_9 : i32
    scf.if %11 {
      %c0_10 = arith.constant 0 : index
      %c0_11 = arith.constant 0 : index
      %12 = vector.load %arg6[%c0_10, %c0_11] : memref<8x128xf32, #tpu.memory_space<vmem>>, vector<8x128xf32>
      %c0_12 = arith.constant 0 : index
      %c0_13 = arith.constant 0 : index
      %13 = vector.load %arg5[%c0_12, %c0_13] : memref<1x128xf32, #tpu.memory_space<vmem>>, vector<1x128xf32>
      %14 = vector.broadcast %13 : vector<1x128xf32> to vector<8x128xf32>
      %15 = arith.addf %12, %14 : vector<8x128xf32>
      %c0_14 = arith.constant 0 : index
      %c0_15 = arith.constant 0 : index
      %16 = vector.load %arg6[%c0_14, %c0_15] : memref<8x128xf32, #tpu.memory_space<vmem>>, vector<8x128xf32>
      tpu.vector_store %arg6[%c0_14, %c0_15], %15 {strides = array<i32>} : memref<8x128xf32, #tpu.memory_space<vmem>>, vector<8x128xf32>,
    } else {
    }
    return
  }
  func.func @transform_0(%arg0: i32, %arg1: i32, %arg2: i32) -> (i32, i32) {
    %c0_i32 = arith.constant 0 : i32
    return %arg0, %arg2 : i32, i32
  }
  func.func @transform_1(%arg0: i32, %arg1: i32, %arg2: i32) -> (i32, i32) {
    %c0_i32 = arith.constant 0 : i32
    return %arg2, %arg1 : i32, i32
  }
  func.func @transform_2(%arg0: i32, %arg1: i32, %arg2: i32) -> (i32, i32) {
    %c0_i32 = arith.constant 0 : i32
    %c0_i32_0 = arith.constant 0 : i32
    return %c0_i32, %arg1 : i32, i32
  }
  func.func @transform_3(%arg0: i32, %arg1: i32, %arg2: i32) -> (i32, i32) {
    %c0_i32 = arith.constant 0 : i32
    return %arg0, %arg1 : i32, i32
  }
}

</mosaic_0001>

<llo_original>
// kernel: tpu_custom_call.1
$region0: #{tpu_custom_call.1}
  #allocation0 [shape = 'u32[]', space=smem, size = 0x4, offset = 0x4, fixed_abs, tag = 'smem constant byte address 0x4 - core index']
  #allocation1 [shape = 'u32[144,128]{1,0:T(1,128)}', space=vmem, size = 0x12000, scoped, tag = 'internal scratch']
  %s0 = inlined_call_operand.hbm [shape: f32[8,128], index: 0, kind: input, shape index: {}]
  %s1 = inlined_call_operand.hbm [shape: f32[128,128], index: 1, kind: input, shape index: {}]
  %s2 = inlined_call_operand.vmem [shape: f32[1,128], index: 2, kind: input, shape index: {}]
  %s3 = inlined_call_operand.hbm [shape: f32[8,128], index: 3, kind: output, shape index: {}]
  %s4 = sld [smem:[#allocation0]]
  $region38: #{tpu_custom_call.1} parent=0
    _
  %s6 = ssub.s32 1, %s4
  %s7 = scalar_select 0, %s6, %s4
  $region1: #{tpu_custom_call.1} parent=0
    #allocation2 [shape = 'u8[4096]{0}', space=vmem, size = 0x1000, scoped, tag = 'input window, operand 0, single buffered']
    #allocation3 [shape = 's32[1]{0}', space=sflag, size = 0x4, scoped, tag = 'scoped memory for tpu_custom_call.1']
    #allocation4 [shape = 's32[1]{0}', space=sflag, size = 0x4, scoped, tag = 'scoped memory for tpu_custom_call.1']
    #allocation5 [shape = 'u8[65536]{0}', space=vmem, size = 0x10000, scoped, tag = 'input window, operand 1, single buffered']
    #allocation6 [shape = 's32[1]{0}', space=sflag, size = 0x4, scoped, tag = 'scoped memory for tpu_custom_call.1']
    #allocation7 [shape = 'u8[4096]{0}', space=vmem, size = 0x1000, scoped, tag = 'output window, operand 0, single buffered']
    %8 = vsyncpa [#allocation3], 0
    %9 = vsyncpa [#allocation6], 0
    %10 = vsyncpa [#allocation4], 0
    // Predicated region
    $region2: #{tpu_custom_call.1} parent=1 // pred_check
      _
    $region3: #{tpu_custom_call.1} parent=1 // pred_check_branch
      %12 = sbr.rel (0) target = $region5
    $region4: #{tpu_custom_call.1} parent=1 // pred_region
      %s14 = ssub.s32 128, 128
      %15 = vsyncadd [#allocation3], %s14
      %s17 = sshll.u32 [#allocation2], 4
      %s18 = int_to_ptr.vmem [resolvable:$true] %s17
      %20 = dma.hbm_to_vmem [thread:$0]  %s0, 128, %s18, [#allocation3]
    $region5: #{tpu_custom_call.1} parent=1 // pred_fallthru
      _
    // Predicated region
    $region6: #{tpu_custom_call.1} parent=1 // pred_check
      _
    $region7: #{tpu_custom_call.1} parent=1 // pred_check_branch
      %22 = sbr.rel (0) target = $region9
    $region8: #{tpu_custom_call.1} parent=1 // pred_region
      %s24 = ssub.s32 2048, 2048
      %25 = vsyncadd [#allocation6], %s24
      %s26 = sshll.u32 [#allocation5], 4
      %s27 = int_to_ptr.vmem [resolvable:$true] %s26
      %32 = dma.hbm_to_vmem [thread:$0]  %s1, 2048, %s27, [#allocation6], 128, 128, 8
    $region9: #{tpu_custom_call.1} parent=1 // pred_fallthru
      _
    // Predicated region
    $region10: #{tpu_custom_call.1} parent=1 // pred_check
      _
    $region11: #{tpu_custom_call.1} parent=1 // pred_check_branch
      %34 = sbr.rel (0) target = $region13
    $region12: #{tpu_custom_call.1} parent=1 // pred_region
      _
    $region13: #{tpu_custom_call.1} parent=1 // pred_fallthru
      _
    // Predicated region
    $region14: #{tpu_custom_call.1} parent=1 // pred_check
      _
    $region15: #{tpu_custom_call.1} parent=1 // pred_check_branch
      %36 = sbr.rel (0) target = $region17
    $region16: #{tpu_custom_call.1} parent=1 // pred_region
      %37 = dma.done [#allocation3], 128
    $region17: #{tpu_custom_call.1} parent=1 // pred_fallthru
      _
    // Predicated region
    $region18: #{tpu_custom_call.1} parent=1 // pred_check
      _
    $region19: #{tpu_custom_call.1} parent=1 // pred_check_branch
      %39 = sbr.rel (0) target = $region21
    $region20: #{tpu_custom_call.1} parent=1 // pred_region
      %40 = dma.done [#allocation6], 2048
    $region21: #{tpu_custom_call.1} parent=1 // pred_fallthru
      _
    %p41 = scmp.eq.s32.totalorder 0, 0
    // Predicated region
    $region22: #{tpu_custom_call.1} parent=1 // pred_check
      %p42 = pneg %p41
    $region23: #{tpu_custom_call.1} parent=1 // pred_check_branch
      %44 = sbr.rel (%p42) target = $region25
    $region24: #{tpu_custom_call.1} parent=1 // pred_region
      %45 = vst [vmem:[#allocation7] sm:$0xff] 0.0
    $region25: #{tpu_custom_call.1} parent=1 // pred_fallthru
      _
    %v46 = vld [vmem:[#allocation7] sm:$0xff]
    %v47 = vld [vmem:[#allocation2] sm:$0xff]
    %v48 = vld [vmem:[#allocation5] sm:$0xff]
    %v49 = vld [vmem:[#allocation5 + $0x8] sm:$0xff]
    %v50 = vld [vmem:[#allocation5 + $0x10] sm:$0xff]
    %v51 = vld [vmem:[#allocation5 + $0x18] sm:$0xff]
    %v52 = vld [vmem:[#allocation5 + $0x20] sm:$0xff]
    %v53 = vld [vmem:[#allocation5 + $0x28] sm:$0xff]
    %v54 = vld [vmem:[#allocation5 + $0x30] sm:$0xff]
    %v55 = vld [vmem:[#allocation5 + $0x38] sm:$0xff]
    %v56 = vld [vmem:[#allocation5 + $0x40] sm:$0xff]
    %v57 = vld [vmem:[#allocation5 + $0x48] sm:$0xff]
    %v58 = vld [vmem:[#allocation5 + $0x50] sm:$0xff]
    %v59 = vld [vmem:[#allocation5 + $0x58] sm:$0xff]
    %v60 = vld [vmem:[#allocation5 + $0x60] sm:$0xff]
    %v61 = vld [vmem:[#allocation5 + $0x68] sm:$0xff]
    %v62 = vld [vmem:[#allocation5 + $0x70] sm:$0xff]
    %v63 = vld [vmem:[#allocation5 + $0x78] sm:$0xff]
    %64 = vmatprep.subr.mxu0 0.0
    %65 = vmatpush1.msra.mxu0 %v48
    %66 = vmatprep.subr.mxu0 0.0
    %67 = vmatpush1.msra.mxu0 %v49
    %68 = vmatprep.subr.mxu0 0.0
    %69 = vmatpush1.msra.mxu0 %v50
    %70 = vmatprep.subr.mxu0 0.0
    %71 = vmatpush1.msra.mxu0 %v51
    %72 = vmatprep.subr.mxu0 0.0
    %73 = vmatpush1.msra.mxu0 %v52
    %74 = vmatprep.subr.mxu0 0.0
    %75 = vmatpush1.msra.mxu0 %v53
    %76 = vmatprep.subr.mxu0 0.0
    %77 = vmatpush1.msra.mxu0 %v54
    %78 = vmatprep.subr.mxu0 0.0
    %79 = vmatpush1.msra.mxu0 %v55
    %80 = vmatprep.subr.mxu0 0.0
    %81 = vmatpush1.msra.mxu0 %v56
    %82 = vmatprep.subr.mxu0 0.0
    %83 = vmatpush1.msra.mxu0 %v57
    %84 = vmatprep.subr.mxu0 0.0
    %85 = vmatpush1.msra.mxu0 %v58
    %86 = vmatprep.subr.mxu0 0.0
    %87 = vmatpush1.msra.mxu0 %v59
    %88 = vmatprep.subr.mxu0 0.0
    %89 = vmatpush1.msra.mxu0 %v60
    %90 = vmatprep.subr.mxu0 0.0
    %91 = vmatpush1.msra.mxu0 %v61
    %92 = vmatprep.subr.mxu0 0.0
    %93 = vmatpush1.msra.mxu0 %v62
    %94 = vmatprep.subr.mxu0 0.0
    %95 = vmatpush1.msra.mxu0 %v63
    %96 = vmatprep.subr.mxu0 0.0
    %97 = vmatpush1.msra.mxu0 0.0
    %98 = vmatprep.subr.mxu0 0.0
    %99 = vmatpush1.msra.mxu0 0.0
    %100 = vmatprep.subr.mxu0 0.0
    %101 = vmatpush1.msra.mxu0 0.0
    %102 = vmatprep.subr.mxu0 0.0
    %103 = vmatpush1.msra.mxu0 0.0
    %104 = vmatprep.subr.mxu0 0.0
    %105 = vmatpush1.msra.mxu0 0.0
    %106 = vmatprep.subr.mxu0 0.0
    %107 = vmatpush1.msra.mxu0 0.0
    %108 = vmatprep.subr.mxu0 0.0
    %109 = vmatpush1.msra.mxu0 0.0
    %110 = vmatprep.subr.mxu0 0.0
    %111 = vmatpush1.msra.mxu0 0.0
    %112 = vmatprep.subr.mxu0 0.0
    %113 = vmatpush1.msra.mxu0 0.0
    %114 = vmatprep.subr.mxu0 0.0
    %115 = vmatpush1.msra.mxu0 0.0
    %116 = vmatprep.subr.mxu0 0.0
    %117 = vmatpush1.msra.mxu0 0.0
    %118 = vmatprep.subr.mxu0 0.0
    %119 = vmatpush1.msra.mxu0 0.0
    %120 = vmatprep.subr.mxu0 0.0
    %121 = vmatpush1.msra.mxu0 0.0
    %122 = vmatprep.subr.mxu0 0.0
    %123 = vmatpush1.msra.mxu0 0.0
    %124 = vmatprep.subr.mxu0 0.0
    %125 = vmatpush1.msra.mxu0 0.0
    %126 = vmatprep.subr.mxu0 0.0
    %127 = vmatpush1.msra.mxu0 0.0
    %128 = vmatprep.mubr.f32.mxu0 0.0
    %129 = vmatmul.mubr.f32.gmra.mrb[0].mxu0 %v47
    %v130 = vpop.f32.mrb[0].mxu0
    %v131 = vadd.f32 0.0, %v130
    %v132 = vpop.f32.mrb[0].mxu0
    %133 = vdwg.mxu0
    %v134 = vadd.f32 %v46, %v131
    %135 = vst [vmem:[#allocation7] sm:$0xff] %v134
    // Predicated region
    $region26: #{tpu_custom_call.1} parent=1 // pred_check
      %p136 = pneg %p41
    $region27: #{tpu_custom_call.1} parent=1 // pred_check_branch
      %138 = sbr.rel (%p136) target = $region29
    $region28: #{tpu_custom_call.1} parent=1 // pred_region
      %v139 = vld [vmem:[#allocation7] sm:$0xff]
      %v140 = vld [vmem:[%s2] sm:$0x1]
      %v142 = vlaneseq
      %v143 = vshrl.u32 %v142, 7
      %v144 = vsub.s32 0, %v143
      %v145 = vrot.slane %v140, %v144
      %v147 = vadd.f32 %v139, %v145
      %148 = vst [vmem:[#allocation7] sm:$0xff] %v147
    $region29: #{tpu_custom_call.1} parent=1 // pred_fallthru
      _
    // Predicated region
    $region30: #{tpu_custom_call.1} parent=1 // pred_check
      _
    $region31: #{tpu_custom_call.1} parent=1 // pred_check_branch
      %150 = sbr.rel (0) target = $region33
    $region32: #{tpu_custom_call.1} parent=1 // pred_region
      %s152 = ssub.s32 128, 128
      %153 = vsyncadd [#allocation4], %s152
      %s155 = sshll.u32 [#allocation7], 4
      %s156 = int_to_ptr.vmem [resolvable:$true] %s155
      %158 = dma.vmem_to_hbm [thread:$0]  %s156, 128, %s3, [#allocation4]
    $region33: #{tpu_custom_call.1} parent=1 // pred_fallthru
      _
    // Predicated region
    $region34: #{tpu_custom_call.1} parent=1 // pred_check
      _
    $region35: #{tpu_custom_call.1} parent=1 // pred_check_branch
      %160 = sbr.rel (0) target = $region37
    $region36: #{tpu_custom_call.1} parent=1 // pred_region
      %161 = dma.done [#allocation4], 128
    $region37: #{tpu_custom_call.1} parent=1 // pred_fallthru
      _
    %162 = vsyncpa [#allocation3], 1
    %163 = vsyncpa [#allocation6], 1
    %164 = vsyncpa [#allocation4], 1

</llo_original>
